<compile_context>
chip_gen: v6e
topology: v6e:2x2x1
jax: 0.10.0
libtpu: 0.0.40
codegen_flags: <defaults>
</compile_context>

<pallas_src>
import functools
import math

import numpy as np
import jax
import jax.numpy as jnp
from jax import lax
from jax.experimental import pallas as pl
from jax.experimental.pallas import tpu as pltpu

# ---- deterministic "parameters" from MVPLoss.__init__ defaults ----
MARGIN = 200.0
SAME_MARGIN = 0.0                       # auto_samemargin (use_auto_samemargin=False)
RELATIVE_MARGIN = MARGIN - SAME_MARGIN  # margin - same_margin

_NEG_SENTINEL = -10000000.0             # same constant as the reference
_MAX_TILE = 256                         # cap output tiles at 256x256 (safe for v7x 64MiB VMEM,
                                        # lane/MXU friendly on v5e(128)/v6e(256))


# ---------------------------------------------------------------------------
# Pallas kernel: one (tm, tn) tile of the ground-metric matrix GM
# ---------------------------------------------------------------------------
def _gm_kernel(sq1_ref, sq2_ref, l1_ref, l2_ref, x1_ref, x2_ref, gm_ref, *, mode):
    # correlation = x1 @ x2.T, expressed as a contraction on the last dim of both
    # operands so no explicit transpose/vreg shuffle is materialized before the MXU.
    corr = lax.dot_general(
        x1_ref[...], x2_ref[...],
        dimension_numbers=(((1,), (1,)), ((), ())),
        preferred_element_type=jnp.float32)                       # (tm, tn)

    # ||x1_i||^2 - 2*corr + ||x2_j||^2  via (tm,1)/(1,tn) broadcasts (norms precomputed)
    gm = sq1_ref[...] - 2.0 * corr + sq2_ref[...]                  # (tm, tn) f32

    # simLabelGeneration: simLabel[i, j] = (label1[i] == label2[j]); keep it bool.
    sim = l1_ref[...] == l2_ref[...]                               # (tm, tn) bool

    hinge_gm = jnp.maximum(0.0, SAME_MARGIN + RELATIVE_MARGIN - gm)
    same_gm = jnp.maximum(0.0, gm - SAME_MARGIN)

    # Single select instead of float cast + (1-sim) + two muls + add.
    if mode == "both":
        out = jnp.where(sim, same_gm, hinge_gm)
    elif mode == "pos":
        out = jnp.where(sim, same_gm, _NEG_SENTINEL)
    else:  # 'neg'
        out = jnp.where(sim, _NEG_SENTINEL, hinge_gm)

    gm_ref[...] = out


@functools.partial(jax.jit, static_argnames=("mode", "cast_bf16"))
def ground_metric_pallas(x1, x2, label1, label2, mode="both", cast_bf16=False):
    """Tiled ground-metric matrix GM (B, B), simLabel + hinge combine fused in-kernel."""
    B, D = x1.shape
    x1 = x1.astype(jnp.float32)
    x2 = x2.astype(jnp.float32)

    # Precompute row norms ONCE in the wrapper; passed as (B,1)/(1,B) blocked inputs
    # so they are not re-reduced for every output tile.
    sq1 = jnp.sum(x1 * x1, axis=1, keepdims=True)                  # (B, 1)
    sq2 = jnp.sum(x2 * x2, axis=1)[None, :]                        # (1, B)
    l1 = label1.reshape(B, 1).astype(jnp.int32)                    # (B, 1)
    l2 = label2.reshape(1, B).astype(jnp.int32)                    # (1, B)

    if cast_bf16:
        # Optional (v5e): bf16-native MXU inputs, f32 accumulate keeps hinge numerics.
        x1 = x1.astype(jnp.bfloat16)
        x2 = x2.astype(jnp.bfloat16)

    tm = B if B <= _MAX_TILE else _MAX_TILE
    tn = B if B <= _MAX_TILE else _MAX_TILE
    grid = (pl.cdiv(B, tm), pl.cdiv(B, tn))

    # TODO(synk): if D grows very large, add a K grid axis ("arbitrary", last) with a
    #             VMEM f32 accumulator; not needed at feat dims used here.
    return pl.pallas_call(
        functools.partial(_gm_kernel, mode=mode),
        out_shape=jax.ShapeDtypeStruct((B, B), jnp.float32),
        grid=grid,
        in_specs=[
            pl.BlockSpec((tm, 1), lambda i, j: (i, 0)),   # sq1
            pl.BlockSpec((1, tn), lambda i, j: (0, j)),   # sq2
            pl.BlockSpec((tm, 1), lambda i, j: (i, 0)),   # label1
            pl.BlockSpec((1, tn), lambda i, j: (0, j)),   # label2
            pl.BlockSpec((tm, D), lambda i, j: (i, 0)),   # x1
            pl.BlockSpec((tn, D), lambda i, j: (j, 0)),   # x2
        ],
        out_specs=pl.BlockSpec((tm, tn), lambda i, j: (i, j)),
        compiler_params=pltpu.CompilerParams(
            dimension_semantics=("parallel", "parallel")),
    )(sq1, sq2, l1, l2, x1, x2)


# ---------------------------------------------------------------------------
# Host-side KM (Kuhn-Munkres) assignment — identical to the reference module,
# which also runs it on CPU via .data.cpu().numpy().
# TODO(synk): KM's recursive, data-dependent DFS has no clean Pallas equivalent;
#             it stays on host in numpy (matching the original PyTorch code).
# ---------------------------------------------------------------------------
class KM_algorithm:
    def __init__(self, groundMetric):
        self.mp = groundMetric
        self.n = groundMetric.shape[0]
        self.link = np.zeros(self.n).astype(np.int16)
        self.lx = np.zeros(self.n)
        self.ly = np.zeros(self.n)
        self.sla = np.zeros(self.n)
        self.visx = np.zeros(self.n).astype(bool)
        self.visy = np.zeros(self.n).astype(bool)

    def DFS(self, x):
        self.visx[x] = True
        for y in range(self.n):
            if self.visy[y]:
                continue
            tmp = self.lx[x] + self.ly[y] - self.mp[x][y]
            if math.fabs(tmp) < 1e-05:
                self.visy[y] = True
                if self.link[y] == -1 or self.DFS(self.link[y]):
                    self.link[y] = x
                    return True
            elif self.sla[y] + 1e-05 > tmp:
                self.sla[y] = tmp
        return False

    def run(self):
        for index in range(self.n):
            self.link[index] = -1
            self.ly[index] = 0.0
            self.lx[index] = np.max(self.mp[index])
        for x in range(self.n):
            self.sla = np.zeros(self.n) + 10000000000.0
            while True:
                self.visx = np.zeros(self.n).astype(bool)
                self.visy = np.zeros(self.n).astype(bool)
                if self.DFS(x):
                    break
                d = 10000000000.0
                for i in range(self.n):
                    if not self.visy[i]:
                        d = min(d, self.sla[i])
                for i in range(self.n):
                    if self.visx[i]:
                        self.lx[i] -= d
                    if self.visy[i]:
                        self.ly[i] += d
                    else:
                        self.sla[i] -= d
        return self.link


# ---------------------------------------------------------------------------
# MVPLoss forward
# ---------------------------------------------------------------------------
def mvp_loss(inputs_batch1, inputs_batch2, targets_batch1, targets_batch2,
             mode="both"):
    # Device (single pallas_call): GM with simLabel + hinge combine fused.
    gm = ground_metric_pallas(inputs_batch1, inputs_batch2,
                              targets_batch1, targets_batch2, mode=mode)

    # Host: optimal-transport-style assignment via KM (as in the reference).
    gm_np = np.asarray(jax.device_get(gm))
    km = KM_algorithm(gm_np.astype(np.float64))
    link = km.run()

    # loss = sum(GM * T) with T[link[i], i] = 1/n  ->  (1/n) * sum_i GM[link[i], i].
    # Computed directly on host (GM is already here); T is never materialized.
    n = gm_np.shape[0]
    valid = link != -1
    cols = np.arange(n)[valid]
    rows = link[valid].astype(np.int64)
    loss_val = gm_np[rows, cols].astype(np.float64).sum() / n
    return jnp.asarray(loss_val, dtype=jnp.float32)


if __name__ == "__main__":
    key = jax.random.PRNGKey(0)
    k1, k2, k3, k4 = jax.random.split(key, 4)

    B, D = 8, 32  # batch_size, feat_dim
    inputs_batch1 = jax.random.normal(k1, (B, D), dtype=jnp.float32)
    inputs_batch2 = jax.random.normal(k2, (B, D), dtype=jnp.float32)
    targets_batch1 = jax.random.randint(k3, (B,), 0, 4, dtype=jnp.int32)
    targets_batch2 = jax.random.randint(k4, (B,), 0, 4, dtype=jnp.int32)

    loss = mvp_loss(inputs_batch1, inputs_batch2,
                    targets_batch1, targets_batch2, mode="both")
    jax.block_until_ready(loss)
    print("KERNEL_OK")
</pallas_src>

<mosaic_0001>
module attributes {stable_mosaic.version = 11 : i64} {
  func.func @_gm_kernel(%arg0: i32, %arg1: i32, %arg2: memref<8x1xf32, #tpu.memory_space<vmem>>, %arg3: memref<1x8xf32, #tpu.memory_space<vmem>>, %arg4: memref<8x1xi32, #tpu.memory_space<vmem>>, %arg5: memref<1x8xi32, #tpu.memory_space<vmem>>, %arg6: memref<8x32xf32, #tpu.memory_space<vmem>>, %arg7: memref<8x32xf32, #tpu.memory_space<vmem>>, %arg8: memref<8x8xf32, #tpu.memory_space<vmem>>) attributes {dimension_semantics = [#tpu.dimension_semantics<parallel>, #tpu.dimension_semantics<parallel>], iteration_bounds = array<i64: 1, 1>, scalar_prefetch = 0 : i64, scratch_operands = 0 : i64, tpu.core_type = #tpu.core_type<tc>, window_params = [{transform_indices = @transform_0, window_bounds = array<i64: 8, 1>}, {transform_indices = @transform_1, window_bounds = array<i64: 1, 8>}, {transform_indices = @transform_2, window_bounds = array<i64: 8, 1>}, {transform_indices = @transform_3, window_bounds = array<i64: 1, 8>}, {transform_indices = @transform_4, window_bounds = array<i64: 8, 32>}, {transform_indices = @transform_5, window_bounds = array<i64: 8, 32>}, {transform_indices = @transform_6, window_bounds = array<i64: 8, 8>}]} {
    %c0 = arith.constant 0 : index
    %c0_0 = arith.constant 0 : index
    %0 = vector.load %arg6[%c0, %c0_0] : memref<8x32xf32, #tpu.memory_space<vmem>>, vector<8x32xf32>
    %c0_1 = arith.constant 0 : index
    %c0_2 = arith.constant 0 : index
    %1 = vector.load %arg7[%c0_1, %c0_2] : memref<8x32xf32, #tpu.memory_space<vmem>>, vector<8x32xf32>
    %cst = arith.constant dense<0.000000e+00> : vector<8x8xf32>
    %2 = tpu.matmul %0, %1, %cst {dimension_numbers = #tpu.dot_dimension_numbers<[1], [1], [0], [0], [0, 0, 1, 0], [], []>} : vector<8x32xf32>, vector<8x32xf32>, vector<8x8xf32> -> vector<8x8xf32>
    %c0_3 = arith.constant 0 : index
    %c0_4 = arith.constant 0 : index
    %3 = vector.load %arg2[%c0_3, %c0_4] : memref<8x1xf32, #tpu.memory_space<vmem>>, vector<8x1xf32>
    %cst_5 = arith.constant 2.000000e+00 : f32
    %4 = vector.broadcast %cst_5 : f32 to vector<8x8xf32>
    %5 = arith.mulf %4, %2 : vector<8x8xf32>
    %6 = vector.broadcast %3 : vector<8x1xf32> to vector<8x8xf32>
    %7 = arith.subf %6, %5 : vector<8x8xf32>
    %c0_6 = arith.constant 0 : index
    %c0_7 = arith.constant 0 : index
    %8 = vector.load %arg3[%c0_6, %c0_7] : memref<1x8xf32, #tpu.memory_space<vmem>>, vector<1x8xf32>
    %9 = vector.broadcast %8 : vector<1x8xf32> to vector<8x8xf32>
    %10 = arith.addf %7, %9 : vector<8x8xf32>
    %c0_8 = arith.constant 0 : index
    %c0_9 = arith.constant 0 : index
    %11 = vector.load %arg4[%c0_8, %c0_9] : memref<8x1xi32, #tpu.memory_space<vmem>>, vector<8x1xi32>
    %c0_10 = arith.constant 0 : index
    %c0_11 = arith.constant 0 : index
    %12 = vector.load %arg5[%c0_10, %c0_11] : memref<1x8xi32, #tpu.memory_space<vmem>>, vector<1x8xi32>
    %13 = vector.broadcast %11 : vector<8x1xi32> to vector<8x8xi32>
    %14 = vector.broadcast %12 : vector<1x8xi32> to vector<8x8xi32>
    %15 = arith.cmpi eq, %13, %14 : vector<8x8xi32>
    %cst_12 = arith.constant 2.000000e+02 : f32
    %16 = vector.broadcast %cst_12 : f32 to vector<8x8xf32>
    %17 = arith.subf %16, %10 : vector<8x8xf32>
    %cst_13 = arith.constant 0.000000e+00 : f32
    %18 = vector.broadcast %cst_13 : f32 to vector<8x8xf32>
    %19 = arith.maximumf %18, %17 : vector<8x8xf32>
    %cst_14 = arith.constant 0.000000e+00 : f32
    %20 = vector.broadcast %cst_14 : f32 to vector<8x8xf32>
    %21 = arith.subf %10, %20 : vector<8x8xf32>
    %cst_15 = arith.constant 0.000000e+00 : f32
    %22 = vector.broadcast %cst_15 : f32 to vector<8x8xf32>
    %23 = arith.maximumf %22, %21 : vector<8x8xf32>
    %24 = arith.select %15, %23, %19 : vector<8x8xi1>, vector<8x8xf32>
    %c0_16 = arith.constant 0 : index
    %c0_17 = arith.constant 0 : index
    %25 = vector.load %arg8[%c0_16, %c0_17] : memref<8x8xf32, #tpu.memory_space<vmem>>, vector<8x8xf32>
    tpu.vector_store %arg8[%c0_16, %c0_17], %24 {strides = array<i32>} : memref<8x8xf32, #tpu.memory_space<vmem>>, vector<8x8xf32>,
    return
  }
  func.func @transform_0(%arg0: i32, %arg1: i32) -> (i32, i32) {
    %c0_i32 = arith.constant 0 : i32
    %c0_i32_0 = arith.constant 0 : i32
    return %arg0, %c0_i32 : i32, i32
  }
  func.func @transform_1(%arg0: i32, %arg1: i32) -> (i32, i32) {
    %c0_i32 = arith.constant 0 : i32
    %c0_i32_0 = arith.constant 0 : i32
    return %c0_i32, %arg1 : i32, i32
  }
  func.func @transform_2(%arg0: i32, %arg1: i32) -> (i32, i32) {
    %c0_i32 = arith.constant 0 : i32
    %c0_i32_0 = arith.constant 0 : i32
    return %arg0, %c0_i32 : i32, i32
  }
  func.func @transform_3(%arg0: i32, %arg1: i32) -> (i32, i32) {
    %c0_i32 = arith.constant 0 : i32
    %c0_i32_0 = arith.constant 0 : i32
    return %c0_i32, %arg1 : i32, i32
  }
  func.func @transform_4(%arg0: i32, %arg1: i32) -> (i32, i32) {
    %c0_i32 = arith.constant 0 : i32
    %c0_i32_0 = arith.constant 0 : i32
    return %arg0, %c0_i32 : i32, i32
  }
  func.func @transform_5(%arg0: i32, %arg1: i32) -> (i32, i32) {
    %c0_i32 = arith.constant 0 : i32
    %c0_i32_0 = arith.constant 0 : i32
    return %arg1, %c0_i32 : i32, i32
  }
  func.func @transform_6(%arg0: i32, %arg1: i32) -> (i32, i32) {
    %c0_i32 = arith.constant 0 : i32
    return %arg0, %arg1 : i32, i32
  }
}

</mosaic_0001>

<llo_original>
// kernel: ground_metric_pallas.1
$region0: #{ground_metric_pallas.1}
  #allocation0 [shape = 'u32[]', space=smem, size = 0x4, offset = 0x4, fixed_abs, tag = 'smem constant byte address 0x4 - core index']
  #allocation1 [shape = 'u32[144,128]{1,0:T(1,128)}', space=vmem, size = 0x12000, scoped, tag = 'internal scratch']
  %s0 = inlined_call_operand.vmem [shape: f32[8,1], index: 0, kind: input, shape index: {}]
  %s1 = inlined_call_operand.vmem [shape: f32[1,8], index: 1, kind: input, shape index: {}]
  %s2 = inlined_call_operand.vmem [shape: s32[8,1], index: 2, kind: input, shape index: {}]
  %s3 = inlined_call_operand.vmem [shape: s32[1,8], index: 3, kind: input, shape index: {}]
  %s4 = inlined_call_operand.vmem [shape: f32[8,32], index: 4, kind: input, shape index: {}]
  %s5 = inlined_call_operand.vmem [shape: f32[8,32], index: 5, kind: input, shape index: {}]
  %s6 = inlined_call_operand.hbm [shape: f32[8,8], index: 6, kind: output, shape index: {}]
  %s7 = sld [smem:[#allocation0]]
  $region34: #{ground_metric_pallas.1} parent=0
    _
  %s9 = ssub.s32 1, %s7
  %s10 = scalar_select 0, %s9, %s7
  $region1: #{ground_metric_pallas.1} parent=0
    #allocation2 [shape = 'u8[4096]{0}', space=vmem, size = 0x1000, scoped, tag = 'output window, operand 0, single buffered']
    #allocation3 [shape = 's32[1]{0}', space=sflag, size = 0x4, scoped, tag = 'scoped memory for ground_metric_pallas.1']
    %11 = vsyncpa [#allocation3], 0
    // Predicated region
    $region2: #{ground_metric_pallas.1} parent=1 // pred_check
      _
    $region3: #{ground_metric_pallas.1} parent=1 // pred_check_branch
      %13 = sbr.rel (0) target = $region5
    $region4: #{ground_metric_pallas.1} parent=1 // pred_region
      _
    $region5: #{ground_metric_pallas.1} parent=1 // pred_fallthru
      _
    // Predicated region
    $region6: #{ground_metric_pallas.1} parent=1 // pred_check
      _
    $region7: #{ground_metric_pallas.1} parent=1 // pred_check_branch
      %15 = sbr.rel (0) target = $region9
    $region8: #{ground_metric_pallas.1} parent=1 // pred_region
      _
    $region9: #{ground_metric_pallas.1} parent=1 // pred_fallthru
      _
    // Predicated region
    $region10: #{ground_metric_pallas.1} parent=1 // pred_check
      _
    $region11: #{ground_metric_pallas.1} parent=1 // pred_check_branch
      %17 = sbr.rel (0) target = $region13
    $region12: #{ground_metric_pallas.1} parent=1 // pred_region
      _
    $region13: #{ground_metric_pallas.1} parent=1 // pred_fallthru
      _
    // Predicated region
    $region14: #{ground_metric_pallas.1} parent=1 // pred_check
      _
    $region15: #{ground_metric_pallas.1} parent=1 // pred_check_branch
      %19 = sbr.rel (0) target = $region17
    $region16: #{ground_metric_pallas.1} parent=1 // pred_region
      _
    $region17: #{ground_metric_pallas.1} parent=1 // pred_fallthru
      _
    // Predicated region
    $region18: #{ground_metric_pallas.1} parent=1 // pred_check
      _
    $region19: #{ground_metric_pallas.1} parent=1 // pred_check_branch
      %21 = sbr.rel (0) target = $region21
    $region20: #{ground_metric_pallas.1} parent=1 // pred_region
      _
    $region21: #{ground_metric_pallas.1} parent=1 // pred_fallthru
      _
    // Predicated region
    $region22: #{ground_metric_pallas.1} parent=1 // pred_check
      _
    $region23: #{ground_metric_pallas.1} parent=1 // pred_check_branch
      %23 = sbr.rel (0) target = $region25
    $region24: #{ground_metric_pallas.1} parent=1 // pred_region
      _
    $region25: #{ground_metric_pallas.1} parent=1 // pred_fallthru
      _
    %v24 = vld [vmem:[%s4] sm:$0xff]
    %v25 = vld [vmem:[%s5] sm:$0xff]
    %vm26 = vcmask 261120
    %v28 = vsel %vm26, %v24, 0
    %v31 = vsel %vm26, %v25, 0
    %33 = vmatprep.subr.mxu0 0.0
    %34 = vmatpush1.xpose.msra.mxu0 0.0
    %35 = vmatprep.subr.mxu0 0.0
    %36 = vmatpush1.xpose.msra.mxu0 0.0
    %37 = vmatprep.subr.mxu0 0.0
    %38 = vmatpush1.xpose.msra.mxu0 0.0
    %39 = vmatprep.subr.mxu0 0.0
    %40 = vmatpush1.xpose.msra.mxu0 0.0
    %41 = vmatprep.subr.mxu0 0.0
    %42 = vmatpush1.xpose.msra.mxu0 0.0
    %43 = vmatprep.subr.mxu0 0.0
    %44 = vmatpush1.xpose.msra.mxu0 0.0
    %45 = vmatprep.subr.mxu0 0.0
    %46 = vmatpush1.xpose.msra.mxu0 0.0
    %47 = vmatprep.subr.mxu0 0.0
    %48 = vmatpush1.xpose.msra.mxu0 0.0
    %49 = vmatprep.subr.mxu0 0.0
    %50 = vmatpush1.xpose.msra.mxu0 0.0
    %51 = vmatprep.subr.mxu0 0.0
    %52 = vmatpush1.xpose.msra.mxu0 0.0
    %53 = vmatprep.subr.mxu0 0.0
    %54 = vmatpush1.xpose.msra.mxu0 0.0
    %55 = vmatprep.subr.mxu0 0.0
    %56 = vmatpush1.xpose.msra.mxu0 0.0
    %57 = vmatprep.subr.mxu0 0.0
    %58 = vmatpush1.xpose.msra.mxu0 0.0
    %59 = vmatprep.subr.mxu0 0.0
    %60 = vmatpush1.xpose.msra.mxu0 0.0
    %61 = vmatprep.subr.mxu0 0.0
    %62 = vmatpush1.xpose.msra.mxu0 0.0
    %63 = vmatprep.subr.mxu0 0.0
    %64 = vmatpush1.xpose.msra.mxu0 %v31
    %65 = vmatprep.subr.mxu0 0.0
    %66 = vmatpush2.xpose.msra.mxu0 0.0
    %67 = vmatprep.subr.mxu0 0.0
    %68 = vmatpush2.xpose.msra.mxu0 0.0
    %69 = vmatprep.subr.mxu0 0.0
    %70 = vmatpush2.xpose.msra.mxu0 0.0
    %71 = vmatprep.subr.mxu0 0.0
    %72 = vmatpush2.xpose.msra.mxu0 0.0
    %73 = vmatprep.subr.mxu0 0.0
    %74 = vmatpush2.xpose.msra.mxu0 0.0
    %75 = vmatprep.subr.mxu0 0.0
    %76 = vmatpush2.xpose.msra.mxu0 0.0
    %77 = vmatprep.subr.mxu0 0.0
    %78 = vmatpush2.xpose.msra.mxu0 0.0
    %79 = vmatprep.subr.mxu0 0.0
    %80 = vmatpush2.xpose.msra.mxu0 0.0
    %81 = vmatprep.subr.mxu0 0.0
    %82 = vmatpush2.xpose.msra.mxu0 0.0
    %83 = vmatprep.subr.mxu0 0.0
    %84 = vmatpush2.xpose.msra.mxu0 0.0
    %85 = vmatprep.subr.mxu0 0.0
    %86 = vmatpush2.xpose.msra.mxu0 0.0
    %87 = vmatprep.subr.mxu0 0.0
    %88 = vmatpush2.xpose.msra.mxu0 0.0
    %89 = vmatprep.subr.mxu0 0.0
    %90 = vmatpush2.xpose.msra.mxu0 0.0
    %91 = vmatprep.subr.mxu0 0.0
    %92 = vmatpush2.xpose.msra.mxu0 0.0
    %93 = vmatprep.subr.mxu0 0.0
    %94 = vmatpush2.xpose.msra.mxu0 0.0
    %95 = vmatprep.subr.mxu0 0.0
    %96 = vmatpush2.xpose.msra.mxu0 0.0
    %97 = vmatprep.mubr.f32.mxu0 0.0
    %98 = vmatmul.mubr.f32.gmra.mxu0 %v28
    %v99 = vpop.f32.mrf.mxu0
    %v100 = vadd.f32 0.0, %v99
    %v101 = vpop.f32.mrf.mxu0
    %102 = vdwg.mxu0
    %v103 = vld [vmem:[%s0] sm:$0xff]
    %v104 = vmul.f32 %v100, 2.0
    %106 = vset.pattern.permute.xlu0 0
    %107 = vperm.xlu0 %106, %v103
    %v108 = vpop.permute.xlu0 %107
    %v110 = vsub.f32 %v108, %v104
    %v111 = vld [vmem:[%s1] sm:$0x1]
    %v113 = vlaneseq
    %v114 = vshrl.u32 %v113, 7
    %v115 = vsub.s32 0, %v114
    %v116 = vrot.slane %v111, %v115
    %v118 = vadd.f32 %v110, %v116
    %v119 = vld [vmem:[%s2] sm:$0xff]
    %v120 = vld [vmem:[%s3] sm:$0x1]
    %121 = vset.pattern.permute.xlu0 0
    %122 = vperm.xlu0 %121, %v119
    %v123 = vpop.permute.xlu0 %122
    %v124 = vlaneseq
    %v125 = vshrl.u32 %v124, 7
    %v126 = vsub.s32 0, %v125
    %v127 = vrot.slane %v120, %v126
    %vm128 = vcmp.eq.s32.totalorder %v123, %v127
    %v129 = vsub.f32 200.0, %v118
    %v130 = vmax.f32 %v129, 0.0
    %v131 = vmax.f32 %v118, 0.0
    %v132 = vsel %vm128, %v131, %v130
    %vm133 = vcmask 64512
    %134 = vst.msk [vmem:[#allocation2] sm:$0xff] %vm133, %v132
    // Predicated region
    $region26: #{ground_metric_pallas.1} parent=1 // pred_check
      _
    $region27: #{ground_metric_pallas.1} parent=1 // pred_check_branch
      %136 = sbr.rel (0) target = $region29
    $region28: #{ground_metric_pallas.1} parent=1 // pred_region
      %s138 = ssub.s32 128, 128
      %139 = vsyncadd [#allocation3], %s138
      %s141 = sshll.u32 [#allocation2], 4
      %s142 = int_to_ptr.vmem [resolvable:$true] %s141
      %144 = dma.vmem_to_hbm [thread:$0]  %s142, 128, %s6, [#allocation3]
    $region29: #{ground_metric_pallas.1} parent=1 // pred_fallthru
      _
    // Predicated region
    $region30: #{ground_metric_pallas.1} parent=1 // pred_check
      _
    $region31: #{ground_metric_pallas.1} parent=1 // pred_check_branch
      %146 = sbr.rel (0) target = $region33
    $region32: #{ground_metric_pallas.1} parent=1 // pred_region
      %147 = dma.done [#allocation3], 128
    $region33: #{ground_metric_pallas.1} parent=1 // pred_fallthru
      _
    %148 = vsyncpa [#allocation3], 1

</llo_original>
